<compile_context>
chip_gen: v7x
topology: tpu7x:2x2x1
jax: 0.10.0
libtpu: 0.0.40
codegen_flags: <defaults>
</compile_context>

<pallas_src>
import jax
import jax.numpy as jnp
from jax import lax
from jax.experimental import pallas as pl
from jax.experimental.pallas import tpu as pltpu

# ----- small hyper-parameters consistent with SAMSGL.__init__ -----
BATCH = 2
SEQ_LEN = 8
NODE_NUM = 16
INPUT_DIM = 4
EMBED_DIM = 32
MEM_NUM = 8
MEM_DIM = 32


# =====================================================================================
# One fused kernel.
#   Graph part (per graph g in {0,1}):
#     E    = We_g @ Memory                                  (N, mem_dim)
#     sim  = cosine-similarity(E)  -> p = (sim + 1)/2       (N, N)
#     adj  = hard Gumbel-softmax over [p, 1-p], channel 0, diag zeroed
#            (channel 0 wins <=> 2p - 1 + (G0 - G1) >= 0, G0 - G1 ~ Logistic(0,1))
#     L    = diag(rowsum(adj)) - adj
#     out  = 2 L / (L.max() - L.min()) - I                  (scaled Laplacian "tilde")
#   Embedding part:
#     emb  = [x @ W_fe + b_fe | node_embeddings (broadcast) | x]   (B*S*N, 2E+F)
# =====================================================================================
def samsgl_fused_kernel(we_ref, mem_ref, logi_ref, x_ref, w_fe_ref, b_fe_ref, ne_ref,
                        graphs_ref, emb_ref):
    n = ne_ref.shape[0]

    # ---------------- graph learning: both graphs in one MXU pass ----------------
    e = jnp.dot(we_ref[...], mem_ref[...], preferred_element_type=jnp.float32)  # (2N, D)
    inv_norm = lax.rsqrt(jnp.sum(e * e, axis=1, keepdims=True) + 1e-24)
    e_n = e * inv_norm
    gram = lax.dot_general(e_n, e_n, (((1,), (1,)), ((), ())),
                           preferred_element_type=jnp.float32)                   # (2N, 2N)

    row = lax.broadcasted_iota(jnp.int32, (n, n), 0)
    col = lax.broadcasted_iota(jnp.int32, (n, n), 1)
    eye = row == col
    eye_f = jnp.where(eye, 1.0, 0.0)

    for g in range(2):                                   # Python-unrolled, static slices
        sim = gram[g * n:(g + 1) * n, g * n:(g + 1) * n]  # per-graph cosine similarity
        p = (sim + 1.0) * 0.5
        # hard Gumbel-softmax argmax over [p, 1-p] with pre-drawn Logistic noise
        adj = jnp.where(2.0 * p - 1.0 + logi_ref[g] >= 0.0, 1.0, 0.0)
        adj = jnp.where(eye, 0.0, adj)                   # torch: masked_fill_(eye, 0)
        d = jnp.sum(adj, axis=1, keepdims=True)          # degrees (N, 1)
        lap = jnp.where(eye, jnp.broadcast_to(d, (n, n)), -adj)
        # lambda_max = L.max() - L.min(); diag = d >= 0, off-diag in {-1, 0}
        #   => max(L) = max(d), min(L) = -(max(d) > 0)
        dmax = jnp.max(d)
        lambda_max = dmax + jnp.where(dmax > 0.0, 1.0, 0.0)
        scale = 2.0 / jnp.maximum(lambda_max, 1e-6)      # eps guards an all-zero graph
        graphs_ref[g] = lap * scale - eye_f

    # ---------------- fused embedding (single lane-dense store) ----------------
    x = x_ref[...]                                                               # (B*S*N, F)
    fe = jnp.dot(x, w_fe_ref[...], preferred_element_type=jnp.float32) + b_fe_ref[...]
    bs = x.shape[0] // n
    ne_b = jnp.broadcast_to(ne_ref[...][None, :, :], (bs, n, ne_ref.shape[1]))
    ne_b = ne_b.reshape(x.shape[0], ne_ref.shape[1])
    emb_ref[...] = jnp.concatenate([fe, ne_b, x], axis=-1)                       # one store


# =====================================================================================
# SAMSGL forward (the parts defined in the provided source).
# =====================================================================================
def samsgl_forward(params, inputs, key):
    B, S, N, F = inputs.shape
    E = params["node_embeddings"].shape[1]

    # Gumbel difference noise (G0 - G1 ~ Logistic(0,1)), one sample per adj entry.
    logistic = jax.random.logistic(key, (2, N, N), jnp.float32)
    we = jnp.concatenate([params["We1"], params["We2"]], axis=0)     # (2N, mem_num)
    x_flat = inputs.reshape(B * S * N, F)

    vmem = pl.BlockSpec(memory_space=pltpu.MemorySpace.VMEM)
    graphs, emb = pl.pallas_call(
        samsgl_fused_kernel,
        out_shape=(jax.ShapeDtypeStruct((2, N, N), jnp.float32),
                   jax.ShapeDtypeStruct((B * S * N, 2 * E + F), jnp.float32)),
        in_specs=[vmem] * 7,
        out_specs=(vmem, vmem),
    )(we, params["Memory"], logistic, x_flat,
      params["W_fe"], params["b_fe"].reshape(1, E), params["node_embeddings"])

    embedding = emb.reshape(B, S, N, 2 * E + F)

    # TODO(synk): SAMSGL_NET (the stacked graph/temporal-conv blocks producing
    # `outputs, delay, weight`, and the final `outputs + inputs[-1]` residual) is not
    # defined in the provided source, so it is not reproduced here.
    return embedding, graphs[0], graphs[1]


def init_params(key):
    ks = jax.random.split(key, 6)

    def xavier(k, shape):
        std = (2.0 / (shape[0] + shape[1])) ** 0.5
        return std * jax.random.normal(k, shape, jnp.float32)

    lim = 1.0 / (INPUT_DIM ** 0.5)
    return {
        "node_embeddings": jax.random.normal(ks[0], (NODE_NUM, EMBED_DIM), jnp.float32),
        "Memory": xavier(ks[1], (MEM_NUM, MEM_DIM)),
        "We1": xavier(ks[2], (NODE_NUM, MEM_NUM)),
        "We2": xavier(ks[3], (NODE_NUM, MEM_NUM)),
        "W_fe": jax.random.uniform(ks[4], (INPUT_DIM, EMBED_DIM), jnp.float32, -lim, lim),
        "b_fe": jax.random.uniform(ks[5], (EMBED_DIM,), jnp.float32, -lim, lim),
    }


if __name__ == "__main__":
    key = jax.random.PRNGKey(0)
    k_in, k_par, k_gum = jax.random.split(key, 3)
    inputs = jax.random.normal(k_in, (BATCH, SEQ_LEN, NODE_NUM, INPUT_DIM), jnp.float32)
    params = init_params(k_par)

    embedding, g1, g2 = jax.jit(samsgl_forward)(params, inputs, k_gum)
    jax.block_until_ready((embedding, g1, g2))

    assert embedding.shape == (BATCH, SEQ_LEN, NODE_NUM, 2 * EMBED_DIM + INPUT_DIM)
    assert g1.shape == (NODE_NUM, NODE_NUM) and g2.shape == (NODE_NUM, NODE_NUM)
    assert bool(jnp.all(jnp.isfinite(embedding)))
    assert bool(jnp.all(jnp.isfinite(g1))) and bool(jnp.all(jnp.isfinite(g2)))
    print("KERNEL_OK")
</pallas_src>

<mosaic_0001>
module attributes {stable_mosaic.version = 11 : i64} {
  func.func @samsgl_fused_kernel(%arg0: memref<32x8xf32, #tpu.memory_space<vmem>>, %arg1: memref<8x32xf32, #tpu.memory_space<vmem>>, %arg2: memref<2x16x16xf32, #tpu.memory_space<vmem>>, %arg3: memref<256x4xf32, #tpu.memory_space<vmem>>, %arg4: memref<4x32xf32, #tpu.memory_space<vmem>>, %arg5: memref<1x32xf32, #tpu.memory_space<vmem>>, %arg6: memref<16x32xf32, #tpu.memory_space<vmem>>, %arg7: memref<2x16x16xf32, #tpu.memory_space<vmem>>, %arg8: memref<256x68xf32, #tpu.memory_space<vmem>>) attributes {dimension_semantics = [], scalar_prefetch = 0 : i64, scratch_operands = 0 : i64, tpu.core_type = #tpu.core_type<tc>} {
    %c0 = arith.constant 0 : index
    %c0_0 = arith.constant 0 : index
    %0 = vector.load %arg0[%c0, %c0_0] : memref<32x8xf32, #tpu.memory_space<vmem>>, vector<32x8xf32>
    %c0_1 = arith.constant 0 : index
    %c0_2 = arith.constant 0 : index
    %1 = vector.load %arg1[%c0_1, %c0_2] : memref<8x32xf32, #tpu.memory_space<vmem>>, vector<8x32xf32>
    %cst = arith.constant dense<0.000000e+00> : vector<32x32xf32>
    %2 = tpu.matmul %0, %1, %cst {dimension_numbers = #tpu.dot_dimension_numbers<[1], [0], [0], [1], [0, 0, 1, 1], [], []>} : vector<32x8xf32>, vector<8x32xf32>, vector<32x32xf32> -> vector<32x32xf32>
    %3 = arith.mulf %2, %2 : vector<32x32xf32>
    %cst_3 = arith.constant dense<0.000000e+00> : vector<32xf32>
    %4 = vector.multi_reduction <add>, %3, %cst_3 [1] : vector<32x32xf32> to vector<32xf32>
    %5 = vector.shape_cast %4 : vector<32xf32> to vector<32x1xf32>
    %cst_4 = arith.constant 1.000000e-24 : f32
    %6 = vector.broadcast %cst_4 : f32 to vector<32x1xf32>
    %7 = arith.addf %5, %6 : vector<32x1xf32>
    %8 = math.rsqrt %7 : vector<32x1xf32>
    %9 = vector.broadcast %8 : vector<32x1xf32> to vector<32x32xf32>
    %10 = arith.mulf %2, %9 : vector<32x32xf32>
    %cst_5 = arith.constant dense<0.000000e+00> : vector<32x32xf32>
    %11 = tpu.matmul %10, %10, %cst_5 {dimension_numbers = #tpu.dot_dimension_numbers<[1], [1], [0], [0], [0, 0, 1, 0], [], []>} : vector<32x32xf32>, vector<32x32xf32>, vector<32x32xf32> -> vector<32x32xf32>
    %12 = tpu.iota {dimensions = array<i32: 0>} : vector<16x16xi32>
    %13 = tpu.iota {dimensions = array<i32: 1>} : vector<16x16xi32>
    %14 = arith.cmpi eq, %12, %13 : vector<16x16xi32>
    %cst_6 = arith.constant 1.000000e+00 : f32
    %cst_7 = arith.constant 0.000000e+00 : f32
    %15 = vector.broadcast %cst_6 : f32 to vector<16x16xf32>
    %16 = vector.broadcast %cst_7 : f32 to vector<16x16xf32>
    %17 = arith.select %14, %15, %16 : vector<16x16xi1>, vector<16x16xf32>
    %18 = vector.extract_strided_slice %11 {offsets = [0, 0], sizes = [16, 16], strides = [1, 1]} : vector<32x32xf32> to vector<16x16xf32>
    %cst_8 = arith.constant 1.000000e+00 : f32
    %19 = vector.broadcast %cst_8 : f32 to vector<16x16xf32>
    %20 = arith.addf %18, %19 : vector<16x16xf32>
    %cst_9 = arith.constant 5.000000e-01 : f32
    %21 = vector.broadcast %cst_9 : f32 to vector<16x16xf32>
    %22 = arith.mulf %20, %21 : vector<16x16xf32>
    %cst_10 = arith.constant 2.000000e+00 : f32
    %23 = vector.broadcast %cst_10 : f32 to vector<16x16xf32>
    %24 = arith.mulf %23, %22 : vector<16x16xf32>
    %cst_11 = arith.constant 1.000000e+00 : f32
    %25 = vector.broadcast %cst_11 : f32 to vector<16x16xf32>
    %26 = arith.subf %24, %25 : vector<16x16xf32>
    %c0_12 = arith.constant 0 : index
    %c0_13 = arith.constant 0 : index
    %c0_14 = arith.constant 0 : index
    %27 = vector.load %arg2[%c0_12, %c0_13, %c0_14] : memref<2x16x16xf32, #tpu.memory_space<vmem>>, vector<1x16x16xf32>
    %28 = vector.shape_cast %27 : vector<1x16x16xf32> to vector<16x16xf32>
    %29 = arith.addf %26, %28 : vector<16x16xf32>
    %cst_15 = arith.constant 0.000000e+00 : f32
    %30 = vector.broadcast %cst_15 : f32 to vector<16x16xf32>
    %31 = arith.cmpf oge, %29, %30 : vector<16x16xf32>
    %cst_16 = arith.constant 1.000000e+00 : f32
    %cst_17 = arith.constant 0.000000e+00 : f32
    %32 = vector.broadcast %cst_16 : f32 to vector<16x16xf32>
    %33 = vector.broadcast %cst_17 : f32 to vector<16x16xf32>
    %34 = arith.select %31, %32, %33 : vector<16x16xi1>, vector<16x16xf32>
    %cst_18 = arith.constant 0.000000e+00 : f32
    %35 = vector.broadcast %cst_18 : f32 to vector<16x16xf32>
    %36 = arith.select %14, %35, %34 : vector<16x16xi1>, vector<16x16xf32>
    %cst_19 = arith.constant dense<0.000000e+00> : vector<16xf32>
    %37 = vector.multi_reduction <add>, %36, %cst_19 [1] : vector<16x16xf32> to vector<16xf32>
    %38 = vector.shape_cast %37 : vector<16xf32> to vector<16x1xf32>
    %39 = vector.shape_cast %38 : vector<16x1xf32> to vector<16x1xf32>
    %40 = vector.broadcast %39 : vector<16x1xf32> to vector<16x16xf32>
    %cst_20 = arith.constant 0.000000e+00 : f32
    %41 = vector.broadcast %cst_20 : f32 to vector<16x16xf32>
    %42 = arith.subf %41, %36 : vector<16x16xf32>
    %43 = arith.select %14, %40, %42 : vector<16x16xi1>, vector<16x16xf32>
    %44 = vector.shape_cast %38 : vector<16x1xf32> to vector<1x16x1xf32>
    %cst_21 = arith.constant dense<0xFF800000> : vector<1xf32>
    %45 = vector.multi_reduction <maximumf>, %44, %cst_21 [1, 2] : vector<1x16x1xf32> to vector<1xf32>
    %46 = vector.shape_cast %45 : vector<1xf32> to vector<1x1x1xf32>
    %47 = vector.extract %46[0, 0, 0] : f32 from vector<1x1x1xf32>
    %cst_22 = arith.constant 0.000000e+00 : f32
    %48 = arith.cmpf ogt, %47, %cst_22 : f32
    %cst_23 = arith.constant 1.000000e+00 : f32
    %cst_24 = arith.constant 0.000000e+00 : f32
    %49 = arith.select %48, %cst_23, %cst_24 : f32
    %50 = arith.addf %47, %49 : f32
    %cst_25 = arith.constant 9.99999997E-7 : f32
    %51 = arith.maximumf %50, %cst_25 : f32
    %cst_26 = arith.constant 2.000000e+00 : f32
    %52 = arith.divf %cst_26, %51 : f32
    %53 = vector.broadcast %52 : f32 to vector<16x16xf32>
    %54 = arith.mulf %43, %53 : vector<16x16xf32>
    %55 = arith.subf %54, %17 : vector<16x16xf32>
    %c0_27 = arith.constant 0 : index
    %c0_28 = arith.constant 0 : index
    %c0_29 = arith.constant 0 : index
    %56 = vector.load %arg7[%c0_27, %c0_28, %c0_29] : memref<2x16x16xf32, #tpu.memory_space<vmem>>, vector<1x16x16xf32>
    %57 = vector.shape_cast %56 : vector<1x16x16xf32> to vector<16x16xf32>
    %58 = vector.shape_cast %55 : vector<16x16xf32> to vector<1x16x16xf32>
    tpu.vector_store %arg7[%c0_27, %c0_28, %c0_29], %58 {strides = array<i32>} : memref<2x16x16xf32, #tpu.memory_space<vmem>>, vector<1x16x16xf32>,
    %59 = vector.extract_strided_slice %11 {offsets = [16, 16], sizes = [16, 16], strides = [1, 1]} : vector<32x32xf32> to vector<16x16xf32>
    %cst_30 = arith.constant 1.000000e+00 : f32
    %60 = vector.broadcast %cst_30 : f32 to vector<16x16xf32>
    %61 = arith.addf %59, %60 : vector<16x16xf32>
    %cst_31 = arith.constant 5.000000e-01 : f32
    %62 = vector.broadcast %cst_31 : f32 to vector<16x16xf32>
    %63 = arith.mulf %61, %62 : vector<16x16xf32>
    %cst_32 = arith.constant 2.000000e+00 : f32
    %64 = vector.broadcast %cst_32 : f32 to vector<16x16xf32>
    %65 = arith.mulf %64, %63 : vector<16x16xf32>
    %cst_33 = arith.constant 1.000000e+00 : f32
    %66 = vector.broadcast %cst_33 : f32 to vector<16x16xf32>
    %67 = arith.subf %65, %66 : vector<16x16xf32>
    %c1 = arith.constant 1 : index
    %c0_34 = arith.constant 0 : index
    %c0_35 = arith.constant 0 : index
    %68 = vector.load %arg2[%c1, %c0_34, %c0_35] : memref<2x16x16xf32, #tpu.memory_space<vmem>>, vector<1x16x16xf32>
    %69 = vector.shape_cast %68 : vector<1x16x16xf32> to vector<16x16xf32>
    %70 = arith.addf %67, %69 : vector<16x16xf32>
    %cst_36 = arith.constant 0.000000e+00 : f32
    %71 = vector.broadcast %cst_36 : f32 to vector<16x16xf32>
    %72 = arith.cmpf oge, %70, %71 : vector<16x16xf32>
    %cst_37 = arith.constant 1.000000e+00 : f32
    %cst_38 = arith.constant 0.000000e+00 : f32
    %73 = vector.broadcast %cst_37 : f32 to vector<16x16xf32>
    %74 = vector.broadcast %cst_38 : f32 to vector<16x16xf32>
    %75 = arith.select %72, %73, %74 : vector<16x16xi1>, vector<16x16xf32>
    %cst_39 = arith.constant 0.000000e+00 : f32
    %76 = vector.broadcast %cst_39 : f32 to vector<16x16xf32>
    %77 = arith.select %14, %76, %75 : vector<16x16xi1>, vector<16x16xf32>
    %cst_40 = arith.constant dense<0.000000e+00> : vector<16xf32>
    %78 = vector.multi_reduction <add>, %77, %cst_40 [1] : vector<16x16xf32> to vector<16xf32>
    %79 = vector.shape_cast %78 : vector<16xf32> to vector<16x1xf32>
    %80 = vector.shape_cast %79 : vector<16x1xf32> to vector<16x1xf32>
    %81 = vector.broadcast %80 : vector<16x1xf32> to vector<16x16xf32>
    %cst_41 = arith.constant 0.000000e+00 : f32
    %82 = vector.broadcast %cst_41 : f32 to vector<16x16xf32>
    %83 = arith.subf %82, %77 : vector<16x16xf32>
    %84 = arith.select %14, %81, %83 : vector<16x16xi1>, vector<16x16xf32>
    %85 = vector.shape_cast %79 : vector<16x1xf32> to vector<1x16x1xf32>
    %cst_42 = arith.constant dense<0xFF800000> : vector<1xf32>
    %86 = vector.multi_reduction <maximumf>, %85, %cst_42 [1, 2] : vector<1x16x1xf32> to vector<1xf32>
    %87 = vector.shape_cast %86 : vector<1xf32> to vector<1x1x1xf32>
    %88 = vector.extract %87[0, 0, 0] : f32 from vector<1x1x1xf32>
    %cst_43 = arith.constant 0.000000e+00 : f32
    %89 = arith.cmpf ogt, %88, %cst_43 : f32
    %cst_44 = arith.constant 1.000000e+00 : f32
    %cst_45 = arith.constant 0.000000e+00 : f32
    %90 = arith.select %89, %cst_44, %cst_45 : f32
    %91 = arith.addf %88, %90 : f32
    %cst_46 = arith.constant 9.99999997E-7 : f32
    %92 = arith.maximumf %91, %cst_46 : f32
    %cst_47 = arith.constant 2.000000e+00 : f32
    %93 = arith.divf %cst_47, %92 : f32
    %94 = vector.broadcast %93 : f32 to vector<16x16xf32>
    %95 = arith.mulf %84, %94 : vector<16x16xf32>
    %96 = arith.subf %95, %17 : vector<16x16xf32>
    %c1_48 = arith.constant 1 : index
    %c0_49 = arith.constant 0 : index
    %c0_50 = arith.constant 0 : index
    %97 = vector.load %arg7[%c1_48, %c0_49, %c0_50] : memref<2x16x16xf32, #tpu.memory_space<vmem>>, vector<1x16x16xf32>
    %98 = vector.shape_cast %97 : vector<1x16x16xf32> to vector<16x16xf32>
    %99 = vector.shape_cast %96 : vector<16x16xf32> to vector<1x16x16xf32>
    tpu.vector_store %arg7[%c1_48, %c0_49, %c0_50], %99 {strides = array<i32>} : memref<2x16x16xf32, #tpu.memory_space<vmem>>, vector<1x16x16xf32>,
    %c0_51 = arith.constant 0 : index
    %c0_52 = arith.constant 0 : index
    %100 = vector.load %arg3[%c0_51, %c0_52] : memref<256x4xf32, #tpu.memory_space<vmem>>, vector<256x4xf32>
    %c0_53 = arith.constant 0 : index
    %c0_54 = arith.constant 0 : index
    %101 = vector.load %arg4[%c0_53, %c0_54] : memref<4x32xf32, #tpu.memory_space<vmem>>, vector<4x32xf32>
    %cst_55 = arith.constant dense<0.000000e+00> : vector<256x32xf32>
    %102 = tpu.matmul %100, %101, %cst_55 {dimension_numbers = #tpu.dot_dimension_numbers<[1], [0], [0], [1], [0, 0, 1, 1], [], []>} : vector<256x4xf32>, vector<4x32xf32>, vector<256x32xf32> -> vector<256x32xf32>
    %c0_56 = arith.constant 0 : index
    %c0_57 = arith.constant 0 : index
    %103 = vector.load %arg5[%c0_56, %c0_57] : memref<1x32xf32, #tpu.memory_space<vmem>>, vector<1x32xf32>
    %104 = vector.broadcast %103 : vector<1x32xf32> to vector<256x32xf32>
    %105 = arith.addf %102, %104 : vector<256x32xf32>
    %c0_58 = arith.constant 0 : index
    %c0_59 = arith.constant 0 : index
    %106 = vector.load %arg6[%c0_58, %c0_59] : memref<16x32xf32, #tpu.memory_space<vmem>>, vector<16x32xf32>
    %107 = vector.shape_cast %106 : vector<16x32xf32> to vector<1x16x32xf32>
    %108 = vector.shape_cast %107 : vector<1x16x32xf32> to vector<1x16x32xf32>
    %109 = vector.broadcast %108 : vector<1x16x32xf32> to vector<16x16x32xf32>
    %110 = vector.shape_cast %109 : vector<16x16x32xf32> to vector<256x32xf32>
    %111 = tpu.concatenate %105, %110, %100 in 1 : vector<256x32xf32>, vector<256x32xf32>, vector<256x4xf32> -> vector<256x68xf32>
    %c0_60 = arith.constant 0 : index
    %c0_61 = arith.constant 0 : index
    %112 = vector.load %arg8[%c0_60, %c0_61] : memref<256x68xf32, #tpu.memory_space<vmem>>, vector<256x68xf32>
    tpu.vector_store %arg8[%c0_60, %c0_61], %111 {strides = array<i32>} : memref<256x68xf32, #tpu.memory_space<vmem>>, vector<256x68xf32>,
    return
  }
}

</mosaic_0001>

<llo_original>
// kernel: samsgl_forward.1
$region0: #{samsgl_forward.1}
  #allocation0 [shape = 'u32[]', space=smem, size = 0x4, offset = 0x4, fixed_abs, tag = 'smem constant byte address 0x4 - core index']
  #allocation1 [shape = 'u32[144,128]{1,0:T(1,128)}', space=vmem, size = 0x12000, scoped, tag = 'internal scratch']
  %s0 = inlined_call_operand.vmem [shape: f32[32,8], index: 0, kind: input, shape index: {}]
  %s1 = inlined_call_operand.vmem [shape: f32[8,32], index: 1, kind: input, shape index: {}]
  %s2 = inlined_call_operand.vmem [shape: f32[2,16,16], index: 2, kind: input, shape index: {}]
  %s3 = inlined_call_operand.vmem [shape: f32[256,4], index: 3, kind: input, shape index: {}]
  %s4 = inlined_call_operand.vmem [shape: f32[4,32], index: 4, kind: input, shape index: {}]
  %s5 = inlined_call_operand.vmem [shape: f32[1,32], index: 5, kind: input, shape index: {}]
  %s6 = inlined_call_operand.vmem [shape: f32[16,32], index: 6, kind: input, shape index: {}]
  %s7 = inlined_call_operand.vmem [shape: f32[2,16,16], index: 7, kind: output, shape index: {0}]
  %s8 = inlined_call_operand.hbm [shape: f32[256,68], index: 8, kind: output, shape index: {1}]
  %9 = xla_tuple %s7, %s8
  %s10 = sld [smem:[#allocation0]]
  $region46: #{samsgl_forward.1} parent=0
    _
  %s12 = ssub.s32 1, %s10
  %s13 = scalar_select 0, %s12, %s10
  $region1: #{samsgl_forward.1} parent=0
    #allocation2 [shape = 'u8[131072]{0}', space=vmem, size = 0x20000, scoped, tag = 'output window, operand 1, single buffered']
    #allocation3 [shape = 's32[1]{0}', space=sflag, size = 0x4, scoped, tag = 'scoped memory for samsgl_forward.1']
    %14 = vsyncpa [#allocation3], 0
    // Predicated region
    $region2: #{samsgl_forward.1} parent=1 // pred_check
      _
    $region3: #{samsgl_forward.1} parent=1 // pred_check_branch
      %16 = sbr.rel (0) target = $region5
    $region4: #{samsgl_forward.1} parent=1 // pred_region
      _
    $region5: #{samsgl_forward.1} parent=1 // pred_fallthru
      _
    // Predicated region
    $region6: #{samsgl_forward.1} parent=1 // pred_check
      _
    $region7: #{samsgl_forward.1} parent=1 // pred_check_branch
      %18 = sbr.rel (0) target = $region9
    $region8: #{samsgl_forward.1} parent=1 // pred_region
      _
    $region9: #{samsgl_forward.1} parent=1 // pred_fallthru
      _
    // Predicated region
    $region10: #{samsgl_forward.1} parent=1 // pred_check
      _
    $region11: #{samsgl_forward.1} parent=1 // pred_check_branch
      %20 = sbr.rel (0) target = $region13
    $region12: #{samsgl_forward.1} parent=1 // pred_region
      _
    $region13: #{samsgl_forward.1} parent=1 // pred_fallthru
      _
    // Predicated region
    $region14: #{samsgl_forward.1} parent=1 // pred_check
      _
    $region15: #{samsgl_forward.1} parent=1 // pred_check_branch
      %22 = sbr.rel (0) target = $region17
    $region16: #{samsgl_forward.1} parent=1 // pred_region
      _
    $region17: #{samsgl_forward.1} parent=1 // pred_fallthru
      _
    // Predicated region
    $region18: #{samsgl_forward.1} parent=1 // pred_check
      _
    $region19: #{samsgl_forward.1} parent=1 // pred_check_branch
      %24 = sbr.rel (0) target = $region21
    $region20: #{samsgl_forward.1} parent=1 // pred_region
      _
    $region21: #{samsgl_forward.1} parent=1 // pred_fallthru
      _
    // Predicated region
    $region22: #{samsgl_forward.1} parent=1 // pred_check
      _
    $region23: #{samsgl_forward.1} parent=1 // pred_check_branch
      %26 = sbr.rel (0) target = $region25
    $region24: #{samsgl_forward.1} parent=1 // pred_region
      _
    $region25: #{samsgl_forward.1} parent=1 // pred_fallthru
      _
    // Predicated region
    $region26: #{samsgl_forward.1} parent=1 // pred_check
      _
    $region27: #{samsgl_forward.1} parent=1 // pred_check_branch
      %28 = sbr.rel (0) target = $region29
    $region28: #{samsgl_forward.1} parent=1 // pred_region
      _
    $region29: #{samsgl_forward.1} parent=1 // pred_fallthru
      _
    %v29 = vld [vmem:[%s0] sm:$0xff]
    %v30 = vld [vmem:[%s0 + $0x8] sm:$0xff]
    %v31 = vld [vmem:[%s0 + $0x10] sm:$0xff]
    %v32 = vld [vmem:[%s0 + $0x18] sm:$0xff]
    %v33 = vld [vmem:[%s1] sm:$0xff]
    %vm34 = vcmask 64512
    %v36 = vsel %vm34, %v29, 0
    %v39 = vsel %vm34, %v30, 0
    %v42 = vsel %vm34, %v31, 0
    %v45 = vsel %vm34, %v32, 0
    %47 = vmatprep.subr.mxu0 0.0
    %48 = vmatpush1.msra.mxu0 %v33
    %49 = vmatprep.subr.mxu0 0.0
    %50 = vmatpush1.msra.mxu0 0.0
    %51 = vmatprep.subr.mxu0 0.0
    %52 = vmatpush1.msra.mxu0 0.0
    %53 = vmatprep.subr.mxu0 0.0
    %54 = vmatpush1.msra.mxu0 0.0
    %55 = vmatprep.subr.mxu0 0.0
    %56 = vmatpush1.msra.mxu0 0.0
    %57 = vmatprep.subr.mxu0 0.0
    %58 = vmatpush1.msra.mxu0 0.0
    %59 = vmatprep.subr.mxu0 0.0
    %60 = vmatpush1.msra.mxu0 0.0
    %61 = vmatprep.subr.mxu0 0.0
    %62 = vmatpush1.msra.mxu0 0.0
    %63 = vmatprep.subr.mxu0 0.0
    %64 = vmatpush1.msra.mxu0 0.0
    %65 = vmatprep.subr.mxu0 0.0
    %66 = vmatpush1.msra.mxu0 0.0
    %67 = vmatprep.subr.mxu0 0.0
    %68 = vmatpush1.msra.mxu0 0.0
    %69 = vmatprep.subr.mxu0 0.0
    %70 = vmatpush1.msra.mxu0 0.0
    %71 = vmatprep.subr.mxu0 0.0
    %72 = vmatpush1.msra.mxu0 0.0
    %73 = vmatprep.subr.mxu0 0.0
    %74 = vmatpush1.msra.mxu0 0.0
    %75 = vmatprep.subr.mxu0 0.0
    %76 = vmatpush1.msra.mxu0 0.0
    %77 = vmatprep.subr.mxu0 0.0
    %78 = vmatpush1.msra.mxu0 0.0
    %79 = vmatprep.subr.mxu0 0.0
    %80 = vmatpush1.msra.mxu0 0.0
    %81 = vmatprep.subr.mxu0 0.0
    %82 = vmatpush1.msra.mxu0 0.0
    %83 = vmatprep.subr.mxu0 0.0
    %84 = vmatpush1.msra.mxu0 0.0
    %85 = vmatprep.subr.mxu0 0.0
    %86 = vmatpush1.msra.mxu0 0.0
    %87 = vmatprep.subr.mxu0 0.0
    %88 = vmatpush1.msra.mxu0 0.0
    %89 = vmatprep.subr.mxu0 0.0
    %90 = vmatpush1.msra.mxu0 0.0
    %91 = vmatprep.subr.mxu0 0.0
    %92 = vmatpush1.msra.mxu0 0.0
    %93 = vmatprep.subr.mxu0 0.0
    %94 = vmatpush1.msra.mxu0 0.0
    %95 = vmatprep.subr.mxu0 0.0
    %96 = vmatpush1.msra.mxu0 0.0
    %97 = vmatprep.subr.mxu0 0.0
    %98 = vmatpush1.msra.mxu0 0.0
    %99 = vmatprep.subr.mxu0 0.0
    %100 = vmatpush1.msra.mxu0 0.0
    %101 = vmatprep.subr.mxu0 0.0
    %102 = vmatpush1.msra.mxu0 0.0
    %103 = vmatprep.subr.mxu0 0.0
    %104 = vmatpush1.msra.mxu0 0.0
    %105 = vmatprep.subr.mxu0 0.0
    %106 = vmatpush1.msra.mxu0 0.0
    %107 = vmatprep.subr.mxu0 0.0
    %108 = vmatpush1.msra.mxu0 0.0
    %109 = vmatprep.subr.mxu0 0.0
    %110 = vmatpush1.msra.mxu0 0.0
    %111 = vmatprep.mubr.f32.mxu0 0.0
    %112 = vmatmul.mubr.f32.gmra.mrb[0].mxu0 %v36
    %v113 = vpop.f32.mrb[0].mxu0
    %v114 = vadd.f32 0.0, %v113
    %v115 = vpop.f32.mrb[0].mxu0
    %116 = vmatprep.mubr.f32.mxu0 0.0
    %117 = vmatmul.mubr.f32.gmra.mrb[0].mxu0 %v39
    %v118 = vpop.f32.mrb[0].mxu0
    %v119 = vadd.f32 0.0, %v118
    %v120 = vpop.f32.mrb[0].mxu0
    %121 = vmatprep.mubr.f32.mxu0 0.0
    %122 = vmatmul.mubr.f32.gmra.mrb[0].mxu0 %v42
    %v123 = vpop.f32.mrb[0].mxu0
    %v124 = vadd.f32 0.0, %v123
    %v125 = vpop.f32.mrb[0].mxu0
    %126 = vmatprep.mubr.f32.mxu0 0.0
    %127 = vmatmul.mubr.f32.gmra.mrb[0].mxu0 %v45
    %v128 = vpop.f32.mrb[0].mxu0
    %v129 = vadd.f32 0.0, %v128
    %v130 = vpop.f32.mrb[0].mxu0
    %131 = vdwg.mxu0
    %v132 = vmul.f32 %v114, %v114
    %v133 = vmul.f32 %v119, %v119
    %v134 = vmul.f32 %v124, %v124
    %v135 = vmul.f32 %v129, %v129
    %vm136 = vcmask 261120
    %v137 = vsel %vm136, %v132, 0.0
    %138 = vadd.xlane.f32.xlu0 %v137
    %v139 = vpop.xlane.xlu0 %138
    %v140 = vsel %vm136, %v133, 0.0
    %141 = vadd.xlane.f32.xlu0 %v140
    %v142 = vpop.xlane.xlu0 %141
    %v143 = vsel %vm136, %v134, 0.0
    %144 = vadd.xlane.f32.xlu0 %v143
    %v145 = vpop.xlane.xlu0 %144
    %v146 = vsel %vm136, %v135, 0.0
    %147 = vadd.xlane.f32.xlu0 %v146
    %v148 = vpop.xlane.xlu0 %147
    %v149 = vadd.f32 %v139, 1e-24
    %v150 = vadd.f32 %v142, 1e-24
    %v151 = vadd.f32 %v145, 1e-24
    %v152 = vadd.f32 %v148, 1e-24
    %v153 = vrsqrt.pop %v149
    %v154 = vrsqrt.pop %v150
    %v155 = vrsqrt.pop %v151
    %v156 = vrsqrt.pop %v152
    %v157 = vmul.f32 %v114, %v153
    %v158 = vmul.f32 %v119, %v154
    %v159 = vmul.f32 %v124, %v155
    %v160 = vmul.f32 %v129, %v156
    %v162 = vsel %vm136, %v157, 0
    %v165 = vsel %vm136, %v158, 0
    %v168 = vsel %vm136, %v159, 0
    %v171 = vsel %vm136, %v160, 0
    %173 = vmatprep.subr.mxu0 0.0
    %174 = vmatpush1.xpose.msra.mxu0 %v162
    %175 = vmatprep.subr.mxu0 0.0
    %176 = vmatpush1.xpose.msra.mxu0 %v165
    %177 = vmatprep.subr.mxu0 0.0
    %178 = vmatpush1.xpose.msra.mxu0 %v168
    %179 = vmatprep.subr.mxu0 0.0
    %180 = vmatpush1.xpose.msra.mxu0 %v171
    %181 = vmatprep.subr.mxu0 0.0
    %182 = vmatpush1.xpose.msra.mxu0 0.0
    %183 = vmatprep.subr.mxu0 0.0
    %184 = vmatpush1.xpose.msra.mxu0 0.0
    %185 = vmatprep.subr.mxu0 0.0
    %186 = vmatpush1.xpose.msra.mxu0 0.0
    %187 = vmatprep.subr.mxu0 0.0
    %188 = vmatpush1.xpose.msra.mxu0 0.0
    %189 = vmatprep.subr.mxu0 0.0
    %190 = vmatpush1.xpose.msra.mxu0 0.0
    %191 = vmatprep.subr.mxu0 0.0
    %192 = vmatpush1.xpose.msra.mxu0 0.0
    %193 = vmatprep.subr.mxu0 0.0
    %194 = vmatpush1.xpose.msra.mxu0 0.0
    %195 = vmatprep.subr.mxu0 0.0
    %196 = vmatpush1.xpose.msra.mxu0 0.0
    %197 = vmatprep.subr.mxu0 0.0
    %198 = vmatpush1.xpose.msra.mxu0 0.0
    %199 = vmatprep.subr.mxu0 0.0
    %200 = vmatpush1.xpose.msra.mxu0 0.0
    %201 = vmatprep.subr.mxu0 0.0
    %202 = vmatpush1.xpose.msra.mxu0 0.0
    %203 = vmatprep.subr.mxu0 0.0
    %204 = vmatpush1.xpose.msra.mxu0 0.0
    %205 = vmatprep.subr.mxu0 0.0
    %206 = vmatpush1.xpose.msra.mxu0 0.0
    %207 = vmatprep.subr.mxu0 0.0
    %208 = vmatpush1.xpose.msra.mxu0 0.0
    %209 = vmatprep.subr.mxu0 0.0
    %210 = vmatpush1.xpose.msra.mxu0 0.0
    %211 = vmatprep.subr.mxu0 0.0
    %212 = vmatpush1.xpose.msra.mxu0 0.0
    %213 = vmatprep.subr.mxu0 0.0
    %214 = vmatpush1.xpose.msra.mxu0 0.0
    %215 = vmatprep.subr.mxu0 0.0
    %216 = vmatpush1.xpose.msra.mxu0 0.0
    %217 = vmatprep.subr.mxu0 0.0
    %218 = vmatpush1.xpose.msra.mxu0 0.0
    %219 = vmatprep.subr.mxu0 0.0
    %220 = vmatpush1.xpose.msra.mxu0 0.0
    %221 = vmatprep.subr.mxu0 0.0
    %222 = vmatpush1.xpose.msra.mxu0 0.0
    %223 = vmatprep.subr.mxu0 0.0
    %224 = vmatpush1.xpose.msra.mxu0 0.0
    %225 = vmatprep.subr.mxu0 0.0
    %226 = vmatpush1.xpose.msra.mxu0 0.0
    %227 = vmatprep.subr.mxu0 0.0
    %228 = vmatpush1.xpose.msra.mxu0 0.0
    %229 = vmatprep.subr.mxu0 0.0
    %230 = vmatpush1.xpose.msra.mxu0 0.0
    %231 = vmatprep.subr.mxu0 0.0
    %232 = vmatpush1.xpose.msra.mxu0 0.0
    %233 = vmatprep.subr.mxu0 0.0
    %234 = vmatpush1.xpose.msra.mxu0 0.0
    %235 = vmatprep.subr.mxu0 0.0
    %236 = vmatpush1.xpose.msra.mxu0 0.0
    %237 = vmatprep.mubr.f32.mxu0 0.0
    %238 = vmatmul.mubr.f32.gmra.mrb[0].mxu0 %v162
    %v239 = vpop.f32.mrb[0].mxu0
    %v240 = vadd.f32 0.0, %v239
    %v241 = vpop.f32.mrb[0].mxu0
    %242 = vmatprep.mubr.f32.mxu0 0.0
    %243 = vmatmul.mubr.f32.gmra.mrb[0].mxu0 %v165
    %v244 = vpop.f32.mrb[0].mxu0
    %v245 = vadd.f32 0.0, %v244
    %v246 = vpop.f32.mrb[0].mxu0
    %247 = vmatprep.mubr.f32.mxu0 0.0
    %248 = vmatmul.mubr.f32.gmra.mrb[0].mxu0 %v168
    %v249 = vpop.f32.mrb[0].mxu0
    %v250 = vadd.f32 0.0, %v249
    %v251 = vpop.f32.mrb[0].mxu0
    %252 = vmatprep.mubr.f32.mxu0 0.0
    %253 = vmatmul.mubr.f32.gmra.mrb[0].mxu0 %v171
    %v254 = vpop.f32.mrb[0].mxu0
    %v255 = vadd.f32 0.0, %v254
    %v256 = vpop.f32.mrb[0].mxu0
    %257 = vdwg.mxu0
    %v258 = vlaneseq
    %v259 = vshrl.u32 %v258, 7
    %v260 = vadd.s32 %v259, 8
    %v261 = vlaneseq
    %v262 = vand.u32 %v261, 127
    %vm263 = vcmp.eq.s32.totalorder %v259, %v262
    %vm264 = vcmp.eq.s32.totalorder %v260, %v262
    %v265 = vsel %vm263, 1.0, 0.0
    %v266 = vsel %vm264, 1.0, 0.0
    %v267 = vadd.f32 %v240, 1.0
    %v268 = vadd.f32 %v245, 1.0
    %v269 = vmul.f32 %v267, 0.5
    %v270 = vmul.f32 %v268, 0.5
    %v271 = vmul.f32 %v269, 2.0
    %v272 = vmul.f32 %v270, 2.0
    %v273 = vsub.f32 %v271, 1.0
    %v274 = vsub.f32 %v272, 1.0
    %v275 = vld [vmem:[%s2] sm:$0xff]
    %v276 = vld [vmem:[%s2 + $0x8] sm:$0xff]
    %v277 = vadd.f32 %v273, %v275
    %v278 = vadd.f32 %v274, %v276
    %vm279 = vcmp.ge.f32.partialorder %v277, 0.0
    %vm280 = vcmp.ge.f32.partialorder %v278, 0.0
    %v281 = vsel %vm279, 1.0, 0.0
    %v282 = vsel %vm280, 1.0, 0.0
    %v283 = vsel %vm263, 0.0, %v281
    %v284 = vsel %vm264, 0.0, %v282
    %vm285 = vcmask 130048
    %v286 = vsel %vm285, %v283, 0.0
    %287 = vadd.xlane.f32.xlu0 %v286
    %v288 = vpop.xlane.xlu0 %287
    %v289 = vsel %vm285, %v284, 0.0
    %290 = vadd.xlane.f32.xlu0 %v289
    %v291 = vpop.xlane.xlu0 %290
    %v292 = vsub.f32 0.0, %v283
    %v293 = vsub.f32 0.0, %v284
    %v294 = vsel %vm263, %v288, %v292
    %v295 = vsel %vm264, %v291, %v293
    %v296 = vmax.f32 %v288, %v291
    %v297 = vrot.slane %v296, 4
    %v298 = vmax.f32 %v296, %v297
    %v299 = vrot.slane %v298, 2
    %v300 = vmax.f32 %v298, %v299
    %v301 = vrot.slane %v300, 1
    %v302 = vmax.f32 %v300, %v301
    %s303 = vtos %v302
    %p304 = scmp.gt.f32.partialorder %s303, 0.0
    %s305 = scalar_select %p304, 1.0, 0.0
    %s306 = sadd.f32 %s303, %s305
    %s307 = smax.f32 %s306, 1e-06
    %v308 = vstv %s307
    %v309 = vrcp.pop %v308
    %s310 = vtos %v309
    %s311 = smul.f32 2.0, %s310
    %v312 = vstv %s311
    %v313 = vmul.f32 %v294, %v312
    %v314 = vmul.f32 %v295, %v312
    %v315 = vsub.f32 %v313, %v265
    %v316 = vsub.f32 %v314, %v266
    %317 = vst.msk [vmem:[%s7] sm:$0xff] %vm285, %v315
    %318 = vst.msk [vmem:[%s7 + $0x8] sm:$0xff] %vm285, %v316
    %v319 = vadd.f32 %v250, 1.0
    %v320 = vadd.f32 %v255, 1.0
    %v321 = vmul.f32 %v319, 0.5
    %v322 = vmul.f32 %v320, 0.5
    %v323 = vmul.f32 %v321, 2.0
    %v324 = vmul.f32 %v322, 2.0
    %v325 = vsub.f32 %v323, 1.0
    %v326 = vsub.f32 %v324, 1.0
    %s327 = scalar_lea.vmem %s2, 16
    %v328 = vld [vmem:[%s327] sm:$0xff]
    %v329 = vld [vmem:[%s327 + $0x8] sm:$0xff]
    %332 = vrot.lane.b32.xlu0 %v328, 16
    %v333 = vpop.permute.xlu0 %332
    %334 = vrot.lane.b32.xlu0 %v329, 16
    %v335 = vpop.permute.xlu0 %334
    %v338 = vadd.f32 %v325, %v333
    %v339 = vadd.f32 %v326, %v335
    %vm340 = vcmp.ge.f32.partialorder %v338, 0.0
    %vm341 = vcmp.ge.f32.partialorder %v339, 0.0
    %v342 = vsel %vm340, 1.0, 0.0
    %v343 = vsel %vm341, 1.0, 0.0
    %346 = vrot.lane.b32.xlu0 %v342, 112
    %v347 = vpop.permute.xlu0 %346
    %348 = vrot.lane.b32.xlu0 %v343, 112
    %v349 = vpop.permute.xlu0 %348
    %v352 = vsel %vm263, 0.0, %v347
    %v353 = vsel %vm264, 0.0, %v349
    %v354 = vsel %vm285, %v352, 0.0
    %355 = vadd.xlane.f32.xlu0 %v354
    %v356 = vpop.xlane.xlu0 %355
    %v357 = vsel %vm285, %v353, 0.0
    %358 = vadd.xlane.f32.xlu0 %v357
    %v359 = vpop.xlane.xlu0 %358
    %v360 = vsub.f32 0.0, %v352
    %v361 = vsub.f32 0.0, %v353
    %v362 = vsel %vm263, %v356, %v360
    %v363 = vsel %vm264, %v359, %v361
    %v364 = vmax.f32 %v356, %v359
    %v365 = vrot.slane %v364, 4
    %v366 = vmax.f32 %v364, %v365
    %v367 = vrot.slane %v366, 2
    %v368 = vmax.f32 %v366, %v367
    %v369 = vrot.slane %v368, 1
    %v370 = vmax.f32 %v368, %v369
    %s371 = vtos %v370
    %p372 = scmp.gt.f32.partialorder %s371, 0.0
    %s373 = scalar_select %p372, 1.0, 0.0
    %s374 = sadd.f32 %s371, %s373
    %s375 = smax.f32 %s374, 1e-06
    %v376 = vstv %s375
    %v377 = vrcp.pop %v376
    %s378 = vtos %v377
    %s379 = smul.f32 2.0, %s378
    %v380 = vstv %s379
    %v381 = vmul.f32 %v362, %v380
    %v382 = vmul.f32 %v363, %v380
    %v383 = vsub.f32 %v381, %v265
    %v384 = vsub.f32 %v382, %v266
    %s385 = scalar_lea.vmem %s7, 16
    %386 = vst.msk [vmem:[%s385] sm:$0xff] %vm285, %v383
    %387 = vst.msk [vmem:[%s385 + $0x8] sm:$0xff] %vm285, %v384
    %v388 = vld [vmem:[%s3] sm:$0xff]
    %v389 = vld [vmem:[%s3 + $0x8] sm:$0xff]
    %v390 = vld [vmem:[%s3 + $0x10] sm:$0xff]
    %v391 = vld [vmem:[%s3 + $0x18] sm:$0xff]
    %v392 = vld [vmem:[%s3 + $0x20] sm:$0xff]
    %v393 = vld [vmem:[%s3 + $0x28] sm:$0xff]
    %v394 = vld [vmem:[%s3 + $0x30] sm:$0xff]
    %v395 = vld [vmem:[%s3 + $0x38] sm:$0xff]
    %v396 = vld [vmem:[%s3 + $0x40] sm:$0xff]
    %v397 = vld [vmem:[%s3 + $0x48] sm:$0xff]
    %v398 = vld [vmem:[%s3 + $0x50] sm:$0xff]
    %v399 = vld [vmem:[%s3 + $0x58] sm:$0xff]
    %v400 = vld [vmem:[%s3 + $0x60] sm:$0xff]
    %v401 = vld [vmem:[%s3 + $0x68] sm:$0xff]
    %v402 = vld [vmem:[%s3 + $0x70] sm:$0xff]
    %v403 = vld [vmem:[%s3 + $0x78] sm:$0xff]
    %v404 = vld [vmem:[%s3 + $0x80] sm:$0xff]
    %v405 = vld [vmem:[%s3 + $0x88] sm:$0xff]
    %v406 = vld [vmem:[%s3 + $0x90] sm:$0xff]
    %v407 = vld [vmem:[%s3 + $0x98] sm:$0xff]
    %v408 = vld [vmem:[%s3 + $0xa0] sm:$0xff]
    %v409 = vld [vmem:[%s3 + $0xa8] sm:$0xff]
    %v410 = vld [vmem:[%s3 + $0xb0] sm:$0xff]
    %v411 = vld [vmem:[%s3 + $0xb8] sm:$0xff]
    %v412 = vld [vmem:[%s3 + $0xc0] sm:$0xff]
    %v413 = vld [vmem:[%s3 + $0xc8] sm:$0xff]
    %v414 = vld [vmem:[%s3 + $0xd0] sm:$0xff]
    %v415 = vld [vmem:[%s3 + $0xd8] sm:$0xff]
    %v416 = vld [vmem:[%s3 + $0xe0] sm:$0xff]
    %v417 = vld [vmem:[%s3 + $0xe8] sm:$0xff]
    %v418 = vld [vmem:[%s3 + $0xf0] sm:$0xff]
    %v419 = vld [vmem:[%s3 + $0xf8] sm:$0xff]
    %v420 = vld [vmem:[%s4] sm:$0xf]
    %v421 = vld [vmem:[%s5] sm:$0x1]
    %v423 = vlaneseq
    %v424 = vshrl.u32 %v423, 7
    %v425 = vsub.s32 0, %v424
    %v426 = vrot.slane %v421, %v425
    %vm428 = vcmask 31744
    %v430 = vsel %vm428, %v388, 0
    %v433 = vsel %vm428, %v389, 0
    %v436 = vsel %vm428, %v390, 0
    %v439 = vsel %vm428, %v391, 0
    %v442 = vsel %vm428, %v392, 0
    %v445 = vsel %vm428, %v393, 0
    %v448 = vsel %vm428, %v394, 0
    %v451 = vsel %vm428, %v395, 0
    %v454 = vsel %vm428, %v396, 0
    %v457 = vsel %vm428, %v397, 0
    %v460 = vsel %vm428, %v398, 0
    %v463 = vsel %vm428, %v399, 0
    %v466 = vsel %vm428, %v400, 0
    %v469 = vsel %vm428, %v401, 0
    %v472 = vsel %vm428, %v402, 0
    %v475 = vsel %vm428, %v403, 0
    %v478 = vsel %vm428, %v404, 0
    %v481 = vsel %vm428, %v405, 0
    %v484 = vsel %vm428, %v406, 0
    %v487 = vsel %vm428, %v407, 0
    %v490 = vsel %vm428, %v408, 0
    %v493 = vsel %vm428, %v409, 0
    %v496 = vsel %vm428, %v410, 0
    %v499 = vsel %vm428, %v411, 0
    %v502 = vsel %vm428, %v412, 0
    %v505 = vsel %vm428, %v413, 0
    %v508 = vsel %vm428, %v414, 0
    %v511 = vsel %vm428, %v415, 0
    %v514 = vsel %vm428, %v416, 0
    %v517 = vsel %vm428, %v417, 0
    %v520 = vsel %vm428, %v418, 0
    %v523 = vsel %vm428, %v419, 0
    %vm525 = vcmask 1043456
    %v527 = vsel %vm525, %v420, 0
    %529 = vmatprep.subr.mxu0 0.0
    %530 = vmatpush1.msra.mxu0 %v527
    %531 = vmatprep.subr.mxu0 0.0
    %532 = vmatpush1.msra.mxu0 0.0
    %533 = vmatprep.subr.mxu0 0.0
    %534 = vmatpush1.msra.mxu0 0.0
    %535 = vmatprep.subr.mxu0 0.0
    %536 = vmatpush1.msra.mxu0 0.0
    %537 = vmatprep.subr.mxu0 0.0
    %538 = vmatpush1.msra.mxu0 0.0
    %539 = vmatprep.subr.mxu0 0.0
    %540 = vmatpush1.msra.mxu0 0.0
    %541 = vmatprep.subr.mxu0 0.0
    %542 = vmatpush1.msra.mxu0 0.0
    %543 = vmatprep.subr.mxu0 0.0
    %544 = vmatpush1.msra.mxu0 0.0
    %545 = vmatprep.subr.mxu0 0.0
    %546 = vmatpush1.msra.mxu0 0.0
    %547 = vmatprep.subr.mxu0 0.0
    %548 = vmatpush1.msra.mxu0 0.0
    %549 = vmatprep.subr.mxu0 0.0
    %550 = vmatpush1.msra.mxu0 0.0
    %551 = vmatprep.subr.mxu0 0.0
    %552 = vmatpush1.msra.mxu0 0.0
    %553 = vmatprep.subr.mxu0 0.0
    %554 = vmatpush1.msra.mxu0 0.0
    %555 = vmatprep.subr.mxu0 0.0
    %556 = vmatpush1.msra.mxu0 0.0
    %557 = vmatprep.subr.mxu0 0.0
    %558 = vmatpush1.msra.mxu0 0.0
    %559 = vmatprep.subr.mxu0 0.0
    %560 = vmatpush1.msra.mxu0 0.0
    %561 = vmatprep.subr.mxu0 0.0
    %562 = vmatpush1.msra.mxu0 0.0
    %563 = vmatprep.subr.mxu0 0.0
    %564 = vmatpush1.msra.mxu0 0.0
    %565 = vmatprep.subr.mxu0 0.0
    %566 = vmatpush1.msra.mxu0 0.0
    %567 = vmatprep.subr.mxu0 0.0
    %568 = vmatpush1.msra.mxu0 0.0
    %569 = vmatprep.subr.mxu0 0.0
    %570 = vmatpush1.msra.mxu0 0.0
    %571 = vmatprep.subr.mxu0 0.0
    %572 = vmatpush1.msra.mxu0 0.0
    %573 = vmatprep.subr.mxu0 0.0
    %574 = vmatpush1.msra.mxu0 0.0
    %575 = vmatprep.subr.mxu0 0.0
    %576 = vmatpush1.msra.mxu0 0.0
    %577 = vmatprep.subr.mxu0 0.0
    %578 = vmatpush1.msra.mxu0 0.0
    %579 = vmatprep.subr.mxu0 0.0
    %580 = vmatpush1.msra.mxu0 0.0
    %581 = vmatprep.subr.mxu0 0.0
    %582 = vmatpush1.msra.mxu0 0.0
    %583 = vmatprep.subr.mxu0 0.0
    %584 = vmatpush1.msra.mxu0 0.0
    %585 = vmatprep.subr.mxu0 0.0
    %586 = vmatpush1.msra.mxu0 0.0
    %587 = vmatprep.subr.mxu0 0.0
    %588 = vmatpush1.msra.mxu0 0.0
    %589 = vmatprep.subr.mxu0 0.0
    %590 = vmatpush1.msra.mxu0 0.0
    %591 = vmatprep.subr.mxu0 0.0
    %592 = vmatpush1.msra.mxu0 0.0
    %593 = vmatprep.mubr.f32.mxu0 0.0
    %594 = vmatmul.mubr.f32.gmra.mrb[0].mxu0 %v430
    %v595 = vpop.f32.mrb[0].mxu0
    %v596 = vadd.f32 %v426, %v595
    %v597 = vpop.f32.mrb[0].mxu0
    %598 = vmatprep.mubr.f32.mxu0 0.0
    %599 = vmatmul.mubr.f32.gmra.mrb[0].mxu0 %v433
    %v600 = vpop.f32.mrb[0].mxu0
    %v601 = vadd.f32 %v426, %v600
    %v602 = vpop.f32.mrb[0].mxu0
    %603 = vmatprep.mubr.f32.mxu0 0.0
    %604 = vmatmul.mubr.f32.gmra.mrb[0].mxu0 %v436
    %v605 = vpop.f32.mrb[0].mxu0
    %v606 = vadd.f32 %v426, %v605
    %v607 = vpop.f32.mrb[0].mxu0
    %608 = vmatprep.mubr.f32.mxu0 0.0
    %609 = vmatmul.mubr.f32.gmra.mrb[0].mxu0 %v439
    %v610 = vpop.f32.mrb[0].mxu0
    %v611 = vadd.f32 %v426, %v610
    %v612 = vpop.f32.mrb[0].mxu0
    %613 = vmatprep.mubr.f32.mxu0 0.0
    %614 = vmatmul.mubr.f32.gmra.mrb[0].mxu0 %v442
    %v615 = vpop.f32.mrb[0].mxu0
    %v616 = vadd.f32 %v426, %v615
    %v617 = vpop.f32.mrb[0].mxu0
    %618 = vmatprep.mubr.f32.mxu0 0.0
    %619 = vmatmul.mubr.f32.gmra.mrb[0].mxu0 %v445
    %v620 = vpop.f32.mrb[0].mxu0
    %v621 = vadd.f32 %v426, %v620
    %v622 = vpop.f32.mrb[0].mxu0
    %623 = vmatprep.mubr.f32.mxu0 0.0
    %624 = vmatmul.mubr.f32.gmra.mrb[0].mxu0 %v448
    %v625 = vpop.f32.mrb[0].mxu0
    %v626 = vadd.f32 %v426, %v625
    %v627 = vpop.f32.mrb[0].mxu0
    %628 = vmatprep.mubr.f32.mxu0 0.0
    %629 = vmatmul.mubr.f32.gmra.mrb[0].mxu0 %v451
    %v630 = vpop.f32.mrb[0].mxu0
    %v631 = vadd.f32 %v426, %v630
    %v632 = vpop.f32.mrb[0].mxu0
    %633 = vmatprep.mubr.f32.mxu0 0.0
    %634 = vmatmul.mubr.f32.gmra.mrb[0].mxu0 %v454
    %v635 = vpop.f32.mrb[0].mxu0
    %v636 = vadd.f32 %v426, %v635
    %v637 = vpop.f32.mrb[0].mxu0
    %638 = vmatprep.mubr.f32.mxu0 0.0
    %639 = vmatmul.mubr.f32.gmra.mrb[0].mxu0 %v457
    %v640 = vpop.f32.mrb[0].mxu0
    %v641 = vadd.f32 %v426, %v640
    %v642 = vpop.f32.mrb[0].mxu0
    %643 = vmatprep.mubr.f32.mxu0 0.0
    %644 = vmatmul.mubr.f32.gmra.mrb[0].mxu0 %v460
    %v645 = vpop.f32.mrb[0].mxu0
    %v646 = vadd.f32 %v426, %v645
    %v647 = vpop.f32.mrb[0].mxu0
    %648 = vmatprep.mubr.f32.mxu0 0.0
    %649 = vmatmul.mubr.f32.gmra.mrb[0].mxu0 %v463
    %v650 = vpop.f32.mrb[0].mxu0
    %v651 = vadd.f32 %v426, %v650
    %v652 = vpop.f32.mrb[0].mxu0
    %653 = vmatprep.mubr.f32.mxu0 0.0
    %654 = vmatmul.mubr.f32.gmra.mrb[0].mxu0 %v466
    %v655 = vpop.f32.mrb[0].mxu0
    %v656 = vadd.f32 %v426, %v655
    %v657 = vpop.f32.mrb[0].mxu0
    %658 = vmatprep.mubr.f32.mxu0 0.0
    %659 = vmatmul.mubr.f32.gmra.mrb[0].mxu0 %v469
    %v660 = vpop.f32.mrb[0].mxu0
    %v661 = vadd.f32 %v426, %v660
    %v662 = vpop.f32.mrb[0].mxu0
    %663 = vmatprep.mubr.f32.mxu0 0.0
    %664 = vmatmul.mubr.f32.gmra.mrb[0].mxu0 %v472
    %v665 = vpop.f32.mrb[0].mxu0
    %v666 = vadd.f32 %v426, %v665
    %v667 = vpop.f32.mrb[0].mxu0
    %668 = vmatprep.mubr.f32.mxu0 0.0
    %669 = vmatmul.mubr.f32.gmra.mrb[0].mxu0 %v475
    %v670 = vpop.f32.mrb[0].mxu0
    %v671 = vadd.f32 %v426, %v670
    %v672 = vpop.f32.mrb[0].mxu0
    %673 = vmatprep.mubr.f32.mxu0 0.0
    %674 = vmatmul.mubr.f32.gmra.mrb[0].mxu0 %v478
    %v675 = vpop.f32.mrb[0].mxu0
    %v676 = vadd.f32 %v426, %v675
    %v677 = vpop.f32.mrb[0].mxu0
    %678 = vmatprep.mubr.f32.mxu0 0.0
    %679 = vmatmul.mubr.f32.gmra.mrb[0].mxu0 %v481
    %v680 = vpop.f32.mrb[0].mxu0
    %v681 = vadd.f32 %v426, %v680
    %v682 = vpop.f32.mrb[0].mxu0
    %683 = vmatprep.mubr.f32.mxu0 0.0
    %684 = vmatmul.mubr.f32.gmra.mrb[0].mxu0 %v484
    %v685 = vpop.f32.mrb[0].mxu0
    %v686 = vadd.f32 %v426, %v685
    %v687 = vpop.f32.mrb[0].mxu0
    %688 = vmatprep.mubr.f32.mxu0 0.0
    %689 = vmatmul.mubr.f32.gmra.mrb[0].mxu0 %v487
    %v690 = vpop.f32.mrb[0].mxu0
    %v691 = vadd.f32 %v426, %v690
    %v692 = vpop.f32.mrb[0].mxu0
    %693 = vmatprep.mubr.f32.mxu0 0.0
    %694 = vmatmul.mubr.f32.gmra.mrb[0].mxu0 %v490
    %v695 = vpop.f32.mrb[0].mxu0
    %v696 = vadd.f32 %v426, %v695
    %v697 = vpop.f32.mrb[0].mxu0
    %698 = vmatprep.mubr.f32.mxu0 0.0
    %699 = vmatmul.mubr.f32.gmra.mrb[0].mxu0 %v493
    %v700 = vpop.f32.mrb[0].mxu0
    %v701 = vadd.f32 %v426, %v700
    %v702 = vpop.f32.mrb[0].mxu0
    %703 = vmatprep.mubr.f32.mxu0 0.0
    %704 = vmatmul.mubr.f32.gmra.mrb[0].mxu0 %v496
    %v705 = vpop.f32.mrb[0].mxu0
    %v706 = vadd.f32 %v426, %v705
    %v707 = vpop.f32.mrb[0].mxu0
    %708 = vmatprep.mubr.f32.mxu0 0.0
    %709 = vmatmul.mubr.f32.gmra.mrb[0].mxu0 %v499
    %v710 = vpop.f32.mrb[0].mxu0
    %v711 = vadd.f32 %v426, %v710
    %v712 = vpop.f32.mrb[0].mxu0
    %713 = vmatprep.mubr.f32.mxu0 0.0
    %714 = vmatmul.mubr.f32.gmra.mrb[0].mxu0 %v502
    %v715 = vpop.f32.mrb[0].mxu0
    %v716 = vadd.f32 %v426, %v715
    %v717 = vpop.f32.mrb[0].mxu0
    %718 = vmatprep.mubr.f32.mxu0 0.0
    %719 = vmatmul.mubr.f32.gmra.mrb[0].mxu0 %v505
    %v720 = vpop.f32.mrb[0].mxu0
    %v721 = vadd.f32 %v426, %v720
    %v722 = vpop.f32.mrb[0].mxu0
    %723 = vmatprep.mubr.f32.mxu0 0.0
    %724 = vmatmul.mubr.f32.gmra.mrb[0].mxu0 %v508
    %v725 = vpop.f32.mrb[0].mxu0
    %v726 = vadd.f32 %v426, %v725
    %v727 = vpop.f32.mrb[0].mxu0
    %728 = vmatprep.mubr.f32.mxu0 0.0
    %729 = vmatmul.mubr.f32.gmra.mrb[0].mxu0 %v511
    %v730 = vpop.f32.mrb[0].mxu0
    %v731 = vadd.f32 %v426, %v730
    %v732 = vpop.f32.mrb[0].mxu0
    %733 = vmatprep.mubr.f32.mxu0 0.0
    %734 = vmatmul.mubr.f32.gmra.mrb[0].mxu0 %v514
    %v735 = vpop.f32.mrb[0].mxu0
    %v736 = vadd.f32 %v426, %v735
    %v737 = vpop.f32.mrb[0].mxu0
    %738 = vmatprep.mubr.f32.mxu0 0.0
    %739 = vmatmul.mubr.f32.gmra.mrb[0].mxu0 %v517
    %v740 = vpop.f32.mrb[0].mxu0
    %v741 = vadd.f32 %v426, %v740
    %v742 = vpop.f32.mrb[0].mxu0
    %743 = vmatprep.mubr.f32.mxu0 0.0
    %744 = vmatmul.mubr.f32.gmra.mrb[0].mxu0 %v520
    %v745 = vpop.f32.mrb[0].mxu0
    %v746 = vadd.f32 %v426, %v745
    %v747 = vpop.f32.mrb[0].mxu0
    %748 = vmatprep.mubr.f32.mxu0 0.0
    %749 = vmatmul.mubr.f32.gmra.mrb[0].mxu0 %v523
    %v750 = vpop.f32.mrb[0].mxu0
    %v751 = vadd.f32 %v426, %v750
    %v752 = vpop.f32.mrb[0].mxu0
    %753 = vdwg.mxu0
    %v754 = vld [vmem:[%s6] sm:$0xff]
    %v755 = vld [vmem:[%s6 + $0x8] sm:$0xff]
    %758 = vrot.lane.b32.xlu0 %v754, 32
    %v759 = vpop.permute.xlu0 %758
    %760 = vrot.lane.b32.xlu0 %v755, 32
    %v761 = vpop.permute.xlu0 %760
    %764 = vrot.lane.b32.xlu0 %v388, 64
    %v765 = vpop.permute.xlu0 %764
    %766 = vrot.lane.b32.xlu0 %v389, 64
    %v767 = vpop.permute.xlu0 %766
    %768 = vrot.lane.b32.xlu0 %v390, 64
    %v769 = vpop.permute.xlu0 %768
    %770 = vrot.lane.b32.xlu0 %v391, 64
    %v771 = vpop.permute.xlu0 %770
    %772 = vrot.lane.b32.xlu0 %v392, 64
    %v773 = vpop.permute.xlu0 %772
    %774 = vrot.lane.b32.xlu0 %v393, 64
    %v775 = vpop.permute.xlu0 %774
    %776 = vrot.lane.b32.xlu0 %v394, 64
    %v777 = vpop.permute.xlu0 %776
    %778 = vrot.lane.b32.xlu0 %v395, 64
    %v779 = vpop.permute.xlu0 %778
    %780 = vrot.lane.b32.xlu0 %v396, 64
    %v781 = vpop.permute.xlu0 %780
    %782 = vrot.lane.b32.xlu0 %v397, 64
    %v783 = vpop.permute.xlu0 %782
    %784 = vrot.lane.b32.xlu0 %v398, 64
    %v785 = vpop.permute.xlu0 %784
    %786 = vrot.lane.b32.xlu0 %v399, 64
    %v787 = vpop.permute.xlu0 %786
    %788 = vrot.lane.b32.xlu0 %v400, 64
    %v789 = vpop.permute.xlu0 %788
    %790 = vrot.lane.b32.xlu0 %v401, 64
    %v791 = vpop.permute.xlu0 %790
    %792 = vrot.lane.b32.xlu0 %v402, 64
    %v793 = vpop.permute.xlu0 %792
    %794 = vrot.lane.b32.xlu0 %v403, 64
    %v795 = vpop.permute.xlu0 %794
    %796 = vrot.lane.b32.xlu0 %v404, 64
    %v797 = vpop.permute.xlu0 %796
    %798 = vrot.lane.b32.xlu0 %v405, 64
    %v799 = vpop.permute.xlu0 %798
    %800 = vrot.lane.b32.xlu0 %v406, 64
    %v801 = vpop.permute.xlu0 %800
    %802 = vrot.lane.b32.xlu0 %v407, 64
    %v803 = vpop.permute.xlu0 %802
    %804 = vrot.lane.b32.xlu0 %v408, 64
    %v805 = vpop.permute.xlu0 %804
    %806 = vrot.lane.b32.xlu0 %v409, 64
    %v807 = vpop.permute.xlu0 %806
    %808 = vrot.lane.b32.xlu0 %v410, 64
    %v809 = vpop.permute.xlu0 %808
    %810 = vrot.lane.b32.xlu0 %v411, 64
    %v811 = vpop.permute.xlu0 %810
    %812 = vrot.lane.b32.xlu0 %v412, 64
    %v813 = vpop.permute.xlu0 %812
    %814 = vrot.lane.b32.xlu0 %v413, 64
    %v815 = vpop.permute.xlu0 %814
    %816 = vrot.lane.b32.xlu0 %v414, 64
    %v817 = vpop.permute.xlu0 %816
    %818 = vrot.lane.b32.xlu0 %v415, 64
    %v819 = vpop.permute.xlu0 %818
    %820 = vrot.lane.b32.xlu0 %v416, 64
    %v821 = vpop.permute.xlu0 %820
    %822 = vrot.lane.b32.xlu0 %v417, 64
    %v823 = vpop.permute.xlu0 %822
    %824 = vrot.lane.b32.xlu0 %v418, 64
    %v825 = vpop.permute.xlu0 %824
    %826 = vrot.lane.b32.xlu0 %v419, 64
    %v827 = vpop.permute.xlu0 %826
    %v860 = vsel %vm136, %v596, %v759
    %v861 = vsel %vm136, %v601, %v761
    %v862 = vsel %vm136, %v606, %v759
    %v863 = vsel %vm136, %v611, %v761
    %v864 = vsel %vm136, %v616, %v759
    %v865 = vsel %vm136, %v621, %v761
    %v866 = vsel %vm136, %v626, %v759
    %v867 = vsel %vm136, %v631, %v761
    %v868 = vsel %vm136, %v636, %v759
    %v869 = vsel %vm136, %v641, %v761
    %v870 = vsel %vm136, %v646, %v759
    %v871 = vsel %vm136, %v651, %v761
    %v872 = vsel %vm136, %v656, %v759
    %v873 = vsel %vm136, %v661, %v761
    %v874 = vsel %vm136, %v666, %v759
    %v875 = vsel %vm136, %v671, %v761
    %v876 = vsel %vm136, %v676, %v759
    %v877 = vsel %vm136, %v681, %v761
    %v878 = vsel %vm136, %v686, %v759
    %v879 = vsel %vm136, %v691, %v761
    %v880 = vsel %vm136, %v696, %v759
    %v881 = vsel %vm136, %v701, %v761
    %v882 = vsel %vm136, %v706, %v759
    %v883 = vsel %vm136, %v711, %v761
    %v884 = vsel %vm136, %v716, %v759
    %v885 = vsel %vm136, %v721, %v761
    %v886 = vsel %vm136, %v726, %v759
    %v887 = vsel %vm136, %v731, %v761
    %v888 = vsel %vm136, %v736, %v759
    %v889 = vsel %vm136, %v741, %v761
    %v890 = vsel %vm136, %v746, %v759
    %v891 = vsel %vm136, %v751, %v761
    %vm892 = vcmask 523264
    %v893 = vsel %vm892, %v860, %v765
    %v894 = vsel %vm892, %v861, %v767
    %v895 = vsel %vm892, %v862, %v769
    %v896 = vsel %vm892, %v863, %v771
    %v897 = vsel %vm892, %v864, %v773
    %v898 = vsel %vm892, %v865, %v775
    %v899 = vsel %vm892, %v866, %v777
    %v900 = vsel %vm892, %v867, %v779
    %v901 = vsel %vm892, %v868, %v781
    %v902 = vsel %vm892, %v869, %v783
    %v903 = vsel %vm892, %v870, %v785
    %v904 = vsel %vm892, %v871, %v787
    %v905 = vsel %vm892, %v872, %v789
    %v906 = vsel %vm892, %v873, %v791
    %v907 = vsel %vm892, %v874, %v793
    %v908 = vsel %vm892, %v875, %v795
    %v909 = vsel %vm892, %v876, %v797
    %v910 = vsel %vm892, %v877, %v799
    %v911 = vsel %vm892, %v878, %v801
    %v912 = vsel %vm892, %v879, %v803
    %v913 = vsel %vm892, %v880, %v805
    %v914 = vsel %vm892, %v881, %v807
    %v915 = vsel %vm892, %v882, %v809
    %v916 = vsel %vm892, %v883, %v811
    %v917 = vsel %vm892, %v884, %v813
    %v918 = vsel %vm892, %v885, %v815
    %v919 = vsel %vm892, %v886, %v817
    %v920 = vsel %vm892, %v887, %v819
    %v921 = vsel %vm892, %v888, %v821
    %v922 = vsel %vm892, %v889, %v823
    %v923 = vsel %vm892, %v890, %v825
    %v924 = vsel %vm892, %v891, %v827
    %vm925 = vcmask 556032
    %926 = vst.msk [vmem:[#allocation2] sm:$0xff] %vm925, %v893
    %927 = vst.msk [vmem:[#allocation2 + $0x8] sm:$0xff] %vm925, %v894
    %928 = vst.msk [vmem:[#allocation2 + $0x10] sm:$0xff] %vm925, %v895
    %929 = vst.msk [vmem:[#allocation2 + $0x18] sm:$0xff] %vm925, %v896
    %930 = vst.msk [vmem:[#allocation2 + $0x20] sm:$0xff] %vm925, %v897
    %931 = vst.msk [vmem:[#allocation2 + $0x28] sm:$0xff] %vm925, %v898
    %932 = vst.msk [vmem:[#allocation2 + $0x30] sm:$0xff] %vm925, %v899
    %933 = vst.msk [vmem:[#allocation2 + $0x38] sm:$0xff] %vm925, %v900
    %934 = vst.msk [vmem:[#allocation2 + $0x40] sm:$0xff] %vm925, %v901
    %935 = vst.msk [vmem:[#allocation2 + $0x48] sm:$0xff] %vm925, %v902
    %936 = vst.msk [vmem:[#allocation2 + $0x50] sm:$0xff] %vm925, %v903
    %937 = vst.msk [vmem:[#allocation2 + $0x58] sm:$0xff] %vm925, %v904
    %938 = vst.msk [vmem:[#allocation2 + $0x60] sm:$0xff] %vm925, %v905
    %939 = vst.msk [vmem:[#allocation2 + $0x68] sm:$0xff] %vm925, %v906
    %940 = vst.msk [vmem:[#allocation2 + $0x70] sm:$0xff] %vm925, %v907
    %941 = vst.msk [vmem:[#allocation2 + $0x78] sm:$0xff] %vm925, %v908
    %942 = vst.msk [vmem:[#allocation2 + $0x80] sm:$0xff] %vm925, %v909
    %943 = vst.msk [vmem:[#allocation2 + $0x88] sm:$0xff] %vm925, %v910
    %944 = vst.msk [vmem:[#allocation2 + $0x90] sm:$0xff] %vm925, %v911
    %945 = vst.msk [vmem:[#allocation2 + $0x98] sm:$0xff] %vm925, %v912
    %946 = vst.msk [vmem:[#allocation2 + $0xa0] sm:$0xff] %vm925, %v913
    %947 = vst.msk [vmem:[#allocation2 + $0xa8] sm:$0xff] %vm925, %v914
    %948 = vst.msk [vmem:[#allocation2 + $0xb0] sm:$0xff] %vm925, %v915
    %949 = vst.msk [vmem:[#allocation2 + $0xb8] sm:$0xff] %vm925, %v916
    %950 = vst.msk [vmem:[#allocation2 + $0xc0] sm:$0xff] %vm925, %v917
    %951 = vst.msk [vmem:[#allocation2 + $0xc8] sm:$0xff] %vm925, %v918
    %952 = vst.msk [vmem:[#allocation2 + $0xd0] sm:$0xff] %vm925, %v919
    %953 = vst.msk [vmem:[#allocation2 + $0xd8] sm:$0xff] %vm925, %v920
    %954 = vst.msk [vmem:[#allocation2 + $0xe0] sm:$0xff] %vm925, %v921
    %955 = vst.msk [vmem:[#allocation2 + $0xe8] sm:$0xff] %vm925, %v922
    %956 = vst.msk [vmem:[#allocation2 + $0xf0] sm:$0xff] %vm925, %v923
    %957 = vst.msk [vmem:[#allocation2 + $0xf8] sm:$0xff] %vm925, %v924
    // Predicated region
    $region30: #{samsgl_forward.1} parent=1 // pred_check
      _
    $region31: #{samsgl_forward.1} parent=1 // pred_check_branch
      %959 = sbr.rel (0) target = $region33
    $region32: #{samsgl_forward.1} parent=1 // pred_region
      _
    $region33: #{samsgl_forward.1} parent=1 // pred_fallthru
      _
    // Predicated region
    $region34: #{samsgl_forward.1} parent=1 // pred_check
      _
    $region35: #{samsgl_forward.1} parent=1 // pred_check_branch
      %961 = sbr.rel (0) target = $region37
    $region36: #{samsgl_forward.1} parent=1 // pred_region
      %s963 = ssub.s32 4096, 4096
      %964 = vsyncadd [#allocation3], %s963
      %s965 = sshll.u32 [#allocation2], 4
      %s966 = int_to_ptr.vmem [resolvable:$true] %s965
      %971 = dma.vmem_to_hbm [thread:$0]  %s966, 4096, %s8, [#allocation3], 128, 128, 8
    $region37: #{samsgl_forward.1} parent=1 // pred_fallthru
      _
    // Predicated region
    $region38: #{samsgl_forward.1} parent=1 // pred_check
      _
    $region39: #{samsgl_forward.1} parent=1 // pred_check_branch
      %973 = sbr.rel (0) target = $region41
    $region40: #{samsgl_forward.1} parent=1 // pred_region
      _
    $region41: #{samsgl_forward.1} parent=1 // pred_fallthru
      _
    // Predicated region
    $region42: #{samsgl_forward.1} parent=1 // pred_check
      _
    $region43: #{samsgl_forward.1} parent=1 // pred_check_branch
      %975 = sbr.rel (0) target = $region45
    $region44: #{samsgl_forward.1} parent=1 // pred_region
      %976 = dma.done [#allocation3], 4096
    $region45: #{samsgl_forward.1} parent=1 // pred_fallthru
      _
    %977 = vsyncpa [#allocation3], 1

</llo_original>
